<compile_context>
chip_gen: v7x
topology: tpu7x:2x2x1
jax: 0.10.0
libtpu: 0.0.40
codegen_flags: <defaults>
</compile_context>

<pallas_src>
import jax
import jax.numpy as jnp
from jax.experimental import pallas as pl
from jax.experimental.pallas import tpu as pltpu

_VMEM_LIMIT = 32 * 1024 * 1024


# ----------------------------------------------------------------------------
# Fused conv kernel: VMEM-side im2col gather + single wide-K matmul + epilogue
# ----------------------------------------------------------------------------

def _make_conv_kernel(shifts, tm, cin, use_lrelu):
    """out = act(scale * (gather(x, shifts) @ W) + shift)."""
    taps = len(shifts)

    if taps == 1:
        # Pre-gathered input (host-side im2col for conv0): plain matmul.
        def kernel(x_ref, w_ref, s_ref, t_ref, o_ref):
            y = jnp.dot(x_ref[...], w_ref[...],
                        preferred_element_type=jnp.float32)
            y = y * s_ref[...] + t_ref[...]
            if use_lrelu:
                y = jnp.where(y >= 0.0, y, 0.2 * y)
            o_ref[...] = y.astype(o_ref.dtype)
        return kernel

    def kernel(x_ref, h_ref, w_ref, s_ref, t_ref, o_ref, g_ref):
        # Gather the kk*kk row-shifted slabs into (TM, taps*C).  Each tap is
        # split statically into a main-block part and a small halo part, so
        # the main block is never copied to a staging buffer.
        for ti, sh in enumerate(shifts):                      # static unroll
            c0 = ti * cin
            if sh == 0:
                g_ref[:, c0:c0 + cin] = x_ref[...]
            else:
                g_ref[:tm - sh, c0:c0 + cin] = x_ref[sh:, :]
                g_ref[tm - sh:, c0:c0 + cin] = h_ref[:sh, :]
        # One wide-K matmul: the tap reduction runs on the MXU, not the VALU.
        y = jnp.dot(g_ref[...], w_ref[...],
                    preferred_element_type=jnp.float32)
        y = y * s_ref[...] + t_ref[...]                       # bias / ActNorm
        if use_lrelu:
            y = jnp.where(y >= 0.0, y, 0.2 * y)               # LeakyReLU(0.2)
        o_ref[...] = y.astype(o_ref.dtype)
    return kernel


def _conv_layer(x, layer, tm=512):
    """x: (B, Hin, Win, C) bf16 (already padded / phase-packed / im2col'd).
       Returns the valid kk x kk conv: (B, Hin-kk+1, Win-kk+1, Cout) bf16."""
    B, Hin, Win, C = x.shape
    kk = layer['kk']
    w = layer['w']                                            # (taps*C, Cout)
    Cout = w.shape[-1]
    taps = kk * kk
    Hout, Wout = Hin - kk + 1, Win - kk + 1

    shifts = [a * Win + c for a in range(kk) for c in range(kk)]
    halo = max(shifts)
    tm = max(tm, ((halo + 127) // 128) * 128)                 # TM mult. of 128

    M = B * Hin * Win
    grid = -(-M // tm)
    Mt = grid * tm
    # tail zeros: covers in-tile shifted reads past M and the last halo block
    x2 = jnp.pad(x.reshape(M, C), ((0, Mt + tm - M), (0, 0)))

    kernel = _make_conv_kernel(shifts, tm, C, layer['lrelu'])
    w_spec = pl.BlockSpec(w.shape, lambda i: (0, 0))          # VMEM-resident
    s_spec = pl.BlockSpec((1, Cout), lambda i: (0, 0))
    common = dict(
        out_shape=jax.ShapeDtypeStruct((Mt, Cout), jnp.bfloat16),
        grid=(grid,),
        out_specs=pl.BlockSpec((tm, Cout), lambda i: (i, 0)),
        compiler_params=pltpu.CompilerParams(
            dimension_semantics=("parallel",),
            vmem_limit_bytes=_VMEM_LIMIT),
    )

    if taps == 1:
        out = pl.pallas_call(
            kernel,
            in_specs=[pl.BlockSpec((tm, C), lambda i: (i, 0)),
                      w_spec, s_spec, s_spec],
            **common,
        )(x2, w, layer['scale'], layer['shift'])
    else:
        # Halo block: smallest divisor of TM (mult. of 8) covering max shift.
        halo_blk = min(c for c in (8, 16, 32, 64, 128, 256, 512, tm)
                       if tm % c == 0 and c >= halo)
        ratio = tm // halo_blk
        out = pl.pallas_call(
            kernel,
            in_specs=[pl.BlockSpec((tm, C), lambda i: (i, 0)),          # tile
                      pl.BlockSpec((halo_blk, C),
                                   lambda i: ((i + 1) * ratio, 0)),     # halo
                      w_spec, s_spec, s_spec],
            scratch_shapes=[pltpu.VMEM((tm, taps * C), jnp.bfloat16)],
            **common,
        )(x2, x2, w, layer['scale'], layer['shift'])

    out = out[:M].reshape(B, Hin, Win, Cout)
    if kk > 1:
        out = out[:, :Hout, :Wout, :]    # boundary garbage rows sliced away
    return out


# ----------------------------------------------------------------------------
# Host-side relayout helpers (1x data; only conv0 gets a tiny im2col at Cin=3)
# ----------------------------------------------------------------------------

def _phase_pack(xp):
    """(B, Hp, Wp, C) -> (B, Hp//2, Wp//2, 4*C): a stride-2 4x4 conv becomes
       a stride-1 2x2 conv on the phase-packed tensor (pure relayout)."""
    B, Hp, Wp, C = xp.shape
    assert Hp % 2 == 0 and Wp % 2 == 0
    phases = [xp[:, ph::2, pw::2, :] for ph in range(2) for pw in range(2)]
    return jnp.concatenate(phases, axis=-1)


def _im2col_stride2_4x4(xp):
    """Full im2col for the Cin=3 first layer only (negligible amplification):
       (B, Hp, Wp, C) -> (B, Ho, Wo, 16*C) with (kh, kw) outer, channel inner."""
    B, Hp, Wp, C = xp.shape
    Ho, Wo = (Hp - 4) // 2 + 1, (Wp - 4) // 2 + 1
    cols = [xp[:, kh:kh + 2 * Ho:2, kw:kw + 2 * Wo:2, :]
            for kh in range(4) for kw in range(4)]
    return jnp.concatenate(cols, axis=-1)


def _pack_w_full(w):
    """(Cout, Cin, 4, 4) torch layout -> (16*Cin, Cout); (kh, kw) outer rows."""
    taps = [w[:, :, a, c].T for a in range(4) for c in range(4)]   # (Cin, Cout)
    return jnp.concatenate(taps, axis=0)


def _pack_w_phase(w):
    """(Cout, Cin, 4, 4) -> (16*Cin, Cout); tap (a,c) in 2x2 outer, within each
       tap channel order matches _phase_pack: (ph, pw) outer, cin inner."""
    rows = []
    for a in range(2):
        for c in range(2):
            for ph in range(2):
                for pw in range(2):
                    rows.append(w[:, :, 2 * a + ph, 2 * c + pw].T)  # (Cin, Cout)
    return jnp.concatenate(rows, axis=0)


# ----------------------------------------------------------------------------
# NLayerDiscriminator (use_actnorm=True), weights pre-packed once at init
# ----------------------------------------------------------------------------

def init_discriminator_params(key, input_nc=3, ndf=64, n_layers=3):
    """weights_init semantics: conv weights ~ N(0, 0.02), conv biases 0,
       ActNorm identity.  Bias + ActNorm are pre-folded into (scale, shift)."""
    keys = jax.random.split(key, n_layers + 2)

    def conv_w(k, cout, cin):
        return 0.02 * jax.random.normal(k, (cout, cin, 4, 4), jnp.float32)

    def finish(packed, bias, cout, *, kk, stride, lrelu, im2col=False,
               pad_out_to=None):
        scale = jnp.ones((cout,), jnp.float32)               # ActNorm identity
        shift = scale * bias                                  # loc = 0
        if pad_out_to is not None and pad_out_to > cout:      # lane-dense out
            packed = jnp.pad(packed, ((0, 0), (0, pad_out_to - cout)))
            scale = jnp.pad(scale, (0, pad_out_to - cout), constant_values=1.0)
            shift = jnp.pad(shift, (0, pad_out_to - cout))
            cout = pad_out_to
        return dict(w=packed.astype(jnp.bfloat16),
                    scale=scale.reshape(1, cout),
                    shift=shift.reshape(1, cout),
                    kk=kk, stride=stride, lrelu=lrelu, im2col=im2col)

    layers = []
    # conv0: stride 2, bias, LeakyReLU (no norm) -> host im2col, K = 48
    layers.append(finish(_pack_w_full(conv_w(keys[0], ndf, input_nc)),
                         jnp.zeros((ndf,), jnp.float32), ndf,
                         kk=1, stride=2, lrelu=True, im2col=True))
    nf_mult = 1
    for n in range(1, n_layers + 1):
        nf_prev, nf_mult = nf_mult, min(2 ** n, 8)
        cin, cout = ndf * nf_prev, ndf * nf_mult
        stride = 2 if n < n_layers else 1
        wn = conv_w(keys[n], cout, cin)
        packed = _pack_w_phase(wn) if stride == 2 else _pack_w_full(wn)
        # TODO(synk): ActNorm data-dependent initialization is skipped (identity init).
        layers.append(finish(packed, jnp.zeros((cout,), jnp.float32), cout,
                             kk=(2 if stride == 2 else 4), stride=stride,
                             lrelu=True))
    # final conv: 1 logit channel, padded to 128 output lanes
    layers.append(finish(_pack_w_full(conv_w(keys[n_layers + 1], 1, ndf * nf_mult)),
                         jnp.zeros((1,), jnp.float32), 1,
                         kk=4, stride=1, lrelu=False, pad_out_to=128))
    return layers


def discriminator_forward(layers, x_nchw):
    x = jnp.transpose(x_nchw, (0, 2, 3, 1)).astype(jnp.bfloat16)   # NHWC once
    for layer in layers:
        xp = jnp.pad(x, ((0, 0), (1, 1), (1, 1), (0, 0)))          # conv pad=1
        if layer['im2col']:
            xp = _im2col_stride2_4x4(xp)                           # layer 0
        elif layer['stride'] == 2:
            xp = _phase_pack(xp)
        x = _conv_layer(xp, layer)
    logits = x[..., 0].astype(jnp.float32)                         # lane 0
    return logits[:, None, :, :]                                   # (B,1,Hl,Wl)


# ----------------------------------------------------------------------------
# Loss reduction kernels
# ----------------------------------------------------------------------------

def _l1_sum_kernel(a_ref, b_ref, o_ref, acc_ref):
    @pl.when(pl.program_id(0) == 0)
    def _():
        acc_ref[...] = jnp.zeros_like(acc_ref)
    a = a_ref[...].astype(jnp.float32)
    b = b_ref[...].astype(jnp.float32)
    acc_ref[...] += jnp.abs(a - b)                     # pure VALU per step

    @pl.when(pl.program_id(0) == pl.num_programs(0) - 1)
    def _():
        o_ref[...] = jnp.sum(acc_ref[...], keepdims=True)   # one XLU collapse


def l1_abs_sum(a, b, tr=2048):
    """sum(|a - b|): tiled, pipelined Pallas reduction with a vector accumulator."""
    n = a.size
    lanes = 128
    rows = -(-n // lanes)
    tr = min(tr, -(-rows // 8) * 8)
    rows_t = -(-rows // tr) * tr
    pad = rows_t * lanes - n
    af, bf = a.reshape(-1), b.reshape(-1)
    if pad:
        af = jnp.pad(af, (0, pad))
        bf = jnp.pad(bf, (0, pad))
    a2 = af.reshape(rows_t, lanes)
    b2 = bf.reshape(rows_t, lanes)
    return pl.pallas_call(
        _l1_sum_kernel,
        out_shape=jax.ShapeDtypeStruct((1, 1), jnp.float32),
        grid=(rows_t // tr,),
        in_specs=[pl.BlockSpec((tr, lanes), lambda i: (i, 0)),
                  pl.BlockSpec((tr, lanes), lambda i: (i, 0))],
        out_specs=pl.BlockSpec((1, 1), lambda i: (0, 0)),
        scratch_shapes=[pltpu.VMEM((tr, lanes), jnp.float32)],
        compiler_params=pltpu.CompilerParams(
            dimension_semantics=("arbitrary",),
            vmem_limit_bytes=_VMEM_LIMIT),
    )(a2, b2)[0, 0]


def _g_loss_kernel(lf_ref, w_ref, o_ref):
    lf = lf_ref[...]                                           # (B, S)
    w = w_ref[...]                                             # (B, 1)
    per = -jnp.mean(lf, axis=1, keepdims=True)
    num = jnp.sum(w * per, axis=0, keepdims=True)
    den = jnp.maximum(jnp.sum(w, axis=0, keepdims=True), 1e-6)
    o_ref[...] = num / den


def _hinge_d_loss_kernel(lr_ref, lf_ref, w_ref, o_ref):
    lr = lr_ref[...]
    lf = lf_ref[...]
    w = w_ref[...]
    loss_real = jnp.mean(jnp.maximum(1.0 - lr, 0.0), axis=1, keepdims=True)
    loss_fake = jnp.mean(jnp.maximum(1.0 + lf, 0.0), axis=1, keepdims=True)
    den = jnp.maximum(jnp.sum(w, axis=0, keepdims=True), 1e-6)
    lr_w = jnp.sum(w * loss_real, axis=0, keepdims=True) / den
    lf_w = jnp.sum(w * loss_fake, axis=0, keepdims=True) / den
    o_ref[...] = 0.5 * (lr_w + lf_w)


def _run_single_block(kernel, arrays):
    return pl.pallas_call(
        kernel,
        out_shape=jax.ShapeDtypeStruct((1, 1), jnp.float32),
        grid=(1,),
        in_specs=[pl.BlockSpec(a.shape, lambda i: (0, 0)) for a in arrays],
        out_specs=pl.BlockSpec((1, 1), lambda i: (0, 0)),
        compiler_params=pltpu.CompilerParams(vmem_limit_bytes=_VMEM_LIMIT),
    )(*arrays)


# ----------------------------------------------------------------------------
# helpers
# ----------------------------------------------------------------------------

def adopt_weight(weight, global_step, threshold=0, value=0.0):
    return jnp.where(jnp.asarray(global_step) < threshold, value, weight)


def measure_perplexity(predicted_indices, n_embed):
    encodings = jax.nn.one_hot(predicted_indices, n_embed,
                               dtype=jnp.float32).reshape(-1, n_embed)
    avg_probs = encodings.mean(0)
    perplexity = jnp.exp(-(avg_probs * jnp.log(avg_probs + 1e-10)).sum())
    cluster_use = jnp.sum(avg_probs > 0)
    return perplexity, cluster_use


# ----------------------------------------------------------------------------
# ResidualVQLPIPSWithDiscriminator.forward
# ----------------------------------------------------------------------------

def residual_vq_lpips_forward(disc_layers, codebook_losses, inputs, reconstructions,
                              optimizer_idx, global_step, layer_idx, discriminator_at,
                              disc_start=0, disc_factor=1.0, disc_weight=1.0,
                              codebook_weight=1.0, perceptual_weight=1.0,
                              split='train', predicted_indices=None, n_classes=None):
    B = inputs.shape[0]

    # ---- reconstruction (L1) loss: tiled Pallas reduction ----
    abs_sum = l1_abs_sum(inputs, reconstructions)
    # TODO(synk): LPIPS perceptual loss requires pretrained VGG16 weights; p_loss = 0 here.
    p_loss = jnp.float32(0.0)
    rec_loss_mean = abs_sum / float(inputs.size) + perceptual_weight * p_loss
    nll_loss = rec_loss_mean

    # per-exemplar weights from (layer_idx == discriminator_at)
    weights = (layer_idx[:, None] == discriminator_at[None, :]).astype(jnp.float32).sum(1)

    disc_factor_eff = adopt_weight(disc_factor, global_step, threshold=disc_start)

    if optimizer_idx == 0:
        logits_fake = discriminator_forward(disc_layers, reconstructions)
        lf2 = logits_fake.reshape(B, -1)
        g_loss = _run_single_block(_g_loss_kernel, [lf2, weights.reshape(B, 1)])[0, 0]

        # TODO(synk): calculate_adaptive_weight needs autograd through the generator's
        # last layer; eval-mode fallback d_weight = 0 is used.
        d_weight = jnp.float32(0.0) * disc_weight

        loss = (nll_loss + d_weight * disc_factor_eff * g_loss
                + codebook_weight * jnp.mean(codebook_losses))
        log = {
            f'{split}/total_loss': loss,
            f'{split}/quant_loss': jnp.mean(codebook_losses),
            f'{split}/nll_loss': nll_loss,
            f'{split}/rec_loss': rec_loss_mean,
            f'{split}/p_loss': p_loss,
            f'{split}/d_weight': d_weight,
            f'{split}/disc_factor': jnp.asarray(disc_factor_eff, jnp.float32),
            f'{split}/g_loss': g_loss,
        }
        if predicted_indices is not None:
            assert n_classes is not None
            for i, (indices, nc) in enumerate(zip(predicted_indices, n_classes)):
                perplexity, cluster_usage = measure_perplexity(indices, nc)
                log[f'{split}/perplexity_{i}'] = perplexity
                log[f'{split}/cluster_usage_{i}'] = cluster_usage
        return loss, log

    if optimizer_idx == 1:
        # one batched forward: halves kernel launches / weight DMAs, doubles grid
        both = jnp.concatenate([inputs, reconstructions], axis=0)
        logits_all = discriminator_forward(disc_layers, both)
        logits_real, logits_fake = logits_all[:B], logits_all[B:]
        d_loss_raw = _run_single_block(
            _hinge_d_loss_kernel,
            [logits_real.reshape(B, -1), logits_fake.reshape(B, -1),
             weights.reshape(B, 1)])[0, 0]
        d_loss = disc_factor_eff * d_loss_raw
        log = {
            f'{split}/disc_loss': d_loss,
            f'{split}/logits_real': jnp.mean(logits_real),
            f'{split}/logits_fake': jnp.mean(logits_fake),
        }
        return d_loss, log


# ----------------------------------------------------------------------------
# main
# ----------------------------------------------------------------------------

if __name__ == "__main__":
    key = jax.random.PRNGKey(0)
    k1, k2, k3, k4 = jax.random.split(key, 4)

    # spatial must be >= 32 so the 3-layer discriminator's 4x4 convs stay valid
    B, C, H, W = 2, 3, 32, 32
    inputs = jax.random.normal(k1, (B, C, H, W), jnp.float32)
    reconstructions = jax.random.normal(k2, (B, C, H, W), jnp.float32)
    codebook_losses = jax.random.uniform(k3, (2,), jnp.float32)

    n_scales = 2
    discriminator_at = jnp.arange(n_scales, dtype=jnp.int32)   # default: all scales
    layer_idx = jnp.array([0, 1], dtype=jnp.int32)             # RVQ scale per sample

    disc_layers = init_discriminator_params(k4, input_nc=C, ndf=64, n_layers=3)

    # generator branch (optimizer_idx = 0)
    loss0, log0 = residual_vq_lpips_forward(
        disc_layers, codebook_losses, inputs, reconstructions,
        optimizer_idx=0, global_step=10, layer_idx=layer_idx,
        discriminator_at=discriminator_at, disc_start=0)

    # discriminator branch (optimizer_idx = 1)
    loss1, log1 = residual_vq_lpips_forward(
        disc_layers, codebook_losses, inputs, reconstructions,
        optimizer_idx=1, global_step=10, layer_idx=layer_idx,
        discriminator_at=discriminator_at, disc_start=0)

    jax.block_until_ready((loss0, loss1, log0, log1))
    print("KERNEL_OK")
</pallas_src>

<mosaic_0001>
module attributes {stable_mosaic.version = 11 : i64} {
  func.func @_l1_sum_kernel(%arg0: i32, %arg1: memref<48x128xf32, #tpu.memory_space<vmem>>, %arg2: memref<48x128xf32, #tpu.memory_space<vmem>>, %arg3: memref<1x1xf32, #tpu.memory_space<vmem>>, %arg4: memref<48x128xf32, #tpu.memory_space<vmem>>) attributes {dimension_semantics = [#tpu.dimension_semantics<arbitrary>], iteration_bounds = array<i64: 1>, scalar_prefetch = 0 : i64, scratch_operands = 1 : i64, tpu.core_type = #tpu.core_type<tc>, window_params = [{transform_indices = @transform_0, window_bounds = array<i64: 48, 128>}, {transform_indices = @transform_1, window_bounds = array<i64: 48, 128>}, {pipeline_mode = #tpu.pipeline_mode<synchronous>, transform_indices = @transform_2, window_bounds = array<i64: 1, 1>}]} {
    %c0_i32 = arith.constant 0 : i32
    %0 = arith.cmpi eq, %arg0, %c0_i32 : i32
    %1 = arith.extui %0 : i1 to i32
    %c0_i32_0 = arith.constant 0 : i32
    %2 = arith.cmpi ne, %1, %c0_i32_0 : i32
    scf.if %2 {
      %cst = arith.constant 0.000000e+00 : f32
      %13 = vector.broadcast %cst : f32 to vector<48x128xf32>
      %c0_10 = arith.constant 0 : index
      %c0_11 = arith.constant 0 : index
      %14 = vector.load %arg4[%c0_10, %c0_11] : memref<48x128xf32, #tpu.memory_space<vmem>>, vector<48x128xf32>
      tpu.vector_store %arg4[%c0_10, %c0_11], %13 {strides = array<i32>} : memref<48x128xf32, #tpu.memory_space<vmem>>, vector<48x128xf32>,
    } else {
    }
    %c0 = arith.constant 0 : index
    %c0_1 = arith.constant 0 : index
    %3 = vector.load %arg1[%c0, %c0_1] : memref<48x128xf32, #tpu.memory_space<vmem>>, vector<48x128xf32>
    %c0_2 = arith.constant 0 : index
    %c0_3 = arith.constant 0 : index
    %4 = vector.load %arg2[%c0_2, %c0_3] : memref<48x128xf32, #tpu.memory_space<vmem>>, vector<48x128xf32>
    %c0_4 = arith.constant 0 : index
    %c0_5 = arith.constant 0 : index
    %5 = vector.load %arg4[%c0_4, %c0_5] : memref<48x128xf32, #tpu.memory_space<vmem>>, vector<48x128xf32>
    %6 = arith.subf %3, %4 : vector<48x128xf32>
    %7 = math.absf %6 : vector<48x128xf32>
    %8 = arith.addf %5, %7 : vector<48x128xf32>
    %c0_6 = arith.constant 0 : index
    %c0_7 = arith.constant 0 : index
    %9 = vector.load %arg4[%c0_6, %c0_7] : memref<48x128xf32, #tpu.memory_space<vmem>>, vector<48x128xf32>
    tpu.vector_store %arg4[%c0_6, %c0_7], %8 {strides = array<i32>} : memref<48x128xf32, #tpu.memory_space<vmem>>, vector<48x128xf32>,
    %c0_i32_8 = arith.constant 0 : i32
    %10 = arith.cmpi eq, %arg0, %c0_i32_8 : i32
    %11 = arith.extui %10 : i1 to i32
    %c0_i32_9 = arith.constant 0 : i32
    %12 = arith.cmpi ne, %11, %c0_i32_9 : i32
    scf.if %12 {
      %c0_10 = arith.constant 0 : index
      %c0_11 = arith.constant 0 : index
      %13 = vector.load %arg4[%c0_10, %c0_11] : memref<48x128xf32, #tpu.memory_space<vmem>>, vector<48x128xf32>
      %14 = vector.shape_cast %13 : vector<48x128xf32> to vector<1x48x128xf32>
      %cst = arith.constant dense<0.000000e+00> : vector<1xf32>
      %15 = vector.multi_reduction <add>, %14, %cst [1, 2] : vector<1x48x128xf32> to vector<1xf32>
      %16 = vector.shape_cast %15 : vector<1xf32> to vector<1x1x1xf32>
      %17 = vector.extract %16[0, 0, 0] : f32 from vector<1x1x1xf32>
      %18 = vector.broadcast %17 : f32 to vector<1x1xf32>
      %c0_12 = arith.constant 0 : index
      %c0_13 = arith.constant 0 : index
      %19 = vector.load %arg3[%c0_12, %c0_13] : memref<1x1xf32, #tpu.memory_space<vmem>>, vector<1x1xf32>
      tpu.vector_store %arg3[%c0_12, %c0_13], %18 {strides = array<i32>} : memref<1x1xf32, #tpu.memory_space<vmem>>, vector<1x1xf32>,
    } else {
    }
    return
  }
  func.func @transform_0(%arg0: i32) -> (i32, i32) {
    %c0_i32 = arith.constant 0 : i32
    %c0_i32_0 = arith.constant 0 : i32
    return %arg0, %c0_i32 : i32, i32
  }
  func.func @transform_1(%arg0: i32) -> (i32, i32) {
    %c0_i32 = arith.constant 0 : i32
    %c0_i32_0 = arith.constant 0 : i32
    return %arg0, %c0_i32 : i32, i32
  }
  func.func @transform_2(%arg0: i32) -> (i32, i32) {
    %c0_i32 = arith.constant 0 : i32
    %c0_i32_0 = arith.constant 0 : i32
    %c0_i32_1 = arith.constant 0 : i32
    return %c0_i32, %c0_i32_0 : i32, i32
  }
}

</mosaic_0001>

<llo_original>
// kernel: tpu_custom_call.1
$region0: #{tpu_custom_call.1}
  #allocation0 [shape = 'u32[]', space=smem, size = 0x4, offset = 0x4, fixed_abs, tag = 'smem constant byte address 0x4 - core index']
  #allocation1 [shape = 'u32[144,128]{1,0:T(1,128)}', space=vmem, size = 0x12000, scoped, tag = 'internal scratch']
  #allocation2 [shape = 'f32[48,128]{1,0:T(8,128)}', space=vmem, size = 0x6000, scoped, tag = 'scratch operand']
  %s0 = inlined_call_operand.hbm [shape: f32[48,128], index: 0, kind: input, shape index: {}]
  %s1 = inlined_call_operand.hbm [shape: f32[48,128], index: 1, kind: input, shape index: {}]
  %s2 = inlined_call_operand.hbm [shape: f32[1,1], index: 2, kind: output, shape index: {}]
  %s3 = sld [smem:[#allocation0]]
  $region34: #{tpu_custom_call.1} parent=0
    _
  %s5 = ssub.s32 1, %s3
  %s6 = scalar_select 0, %s5, %s3
  $region1: #{tpu_custom_call.1} parent=0
    #allocation3 [shape = 'u8[24576]{0}', space=vmem, size = 0x6000, scoped, tag = 'input window, operand 0, single buffered']
    #allocation4 [shape = 's32[1]{0}', space=sflag, size = 0x4, scoped, tag = 'scoped memory for tpu_custom_call.1']
    #allocation5 [shape = 's32[1]{0}', space=sflag, size = 0x4, scoped, tag = 'scoped memory for tpu_custom_call.1']
    #allocation6 [shape = 'u8[24576]{0}', space=vmem, size = 0x6000, scoped, tag = 'input window, operand 1, single buffered']
    #allocation7 [shape = 's32[1]{0}', space=sflag, size = 0x4, scoped, tag = 'scoped memory for tpu_custom_call.1']
    #allocation8 [shape = 'u8[512]{0}', space=vmem, size = 0x400, scoped, tag = 'output window, operand 0, single buffered']
    %7 = vsyncpa [#allocation4], 0
    %8 = vsyncpa [#allocation7], 0
    %9 = vsyncpa [#allocation5], 0
    // Predicated region
    $region2: #{tpu_custom_call.1} parent=1 // pred_check
      _
    $region3: #{tpu_custom_call.1} parent=1 // pred_check_branch
      %11 = sbr.rel (0) target = $region5
    $region4: #{tpu_custom_call.1} parent=1 // pred_region
      %s13 = ssub.s32 768, 768
      %14 = vsyncadd [#allocation4], %s13
      %s15 = sshll.u32 [#allocation3], 4
      %s16 = int_to_ptr.vmem [resolvable:$true] %s15
      %21 = dma.hbm_to_vmem [thread:$0]  %s0, 768, %s16, [#allocation4], 128, 128, 8
    $region5: #{tpu_custom_call.1} parent=1 // pred_fallthru
      _
    // Predicated region
    $region6: #{tpu_custom_call.1} parent=1 // pred_check
      _
    $region7: #{tpu_custom_call.1} parent=1 // pred_check_branch
      %23 = sbr.rel (0) target = $region9
    $region8: #{tpu_custom_call.1} parent=1 // pred_region
      %s25 = ssub.s32 768, 768
      %26 = vsyncadd [#allocation7], %s25
      %s27 = sshll.u32 [#allocation6], 4
      %s28 = int_to_ptr.vmem [resolvable:$true] %s27
      %33 = dma.hbm_to_vmem [thread:$0]  %s1, 768, %s28, [#allocation7], 128, 128, 8
    $region9: #{tpu_custom_call.1} parent=1 // pred_fallthru
      _
    // Predicated region
    $region10: #{tpu_custom_call.1} parent=1 // pred_check
      _
    $region11: #{tpu_custom_call.1} parent=1 // pred_check_branch
      %35 = sbr.rel (0) target = $region13
    $region12: #{tpu_custom_call.1} parent=1 // pred_region
      %36 = dma.done [#allocation4], 768
    $region13: #{tpu_custom_call.1} parent=1 // pred_fallthru
      _
    // Predicated region
    $region14: #{tpu_custom_call.1} parent=1 // pred_check
      _
    $region15: #{tpu_custom_call.1} parent=1 // pred_check_branch
      %38 = sbr.rel (0) target = $region17
    $region16: #{tpu_custom_call.1} parent=1 // pred_region
      %39 = dma.done [#allocation7], 768
    $region17: #{tpu_custom_call.1} parent=1 // pred_fallthru
      _
    %p40 = scmp.eq.s32.totalorder 0, 0
    // Predicated region
    $region18: #{tpu_custom_call.1} parent=1 // pred_check
      %p41 = pneg %p40
    $region19: #{tpu_custom_call.1} parent=1 // pred_check_branch
      %43 = sbr.rel (%p41) target = $region21
    $region20: #{tpu_custom_call.1} parent=1 // pred_region
      %44 = vst [vmem:[#allocation2] sm:$0xff] 0.0
      %45 = vst [vmem:[#allocation2 + $0x8] sm:$0xff] 0.0
      %46 = vst [vmem:[#allocation2 + $0x10] sm:$0xff] 0.0
      %47 = vst [vmem:[#allocation2 + $0x18] sm:$0xff] 0.0
      %48 = vst [vmem:[#allocation2 + $0x20] sm:$0xff] 0.0
      %49 = vst [vmem:[#allocation2 + $0x28] sm:$0xff] 0.0
    $region21: #{tpu_custom_call.1} parent=1 // pred_fallthru
      _
    %v50 = vld [vmem:[#allocation3] sm:$0xff]
    %v51 = vld [vmem:[#allocation3 + $0x8] sm:$0xff]
    %v52 = vld [vmem:[#allocation3 + $0x10] sm:$0xff]
    %v53 = vld [vmem:[#allocation3 + $0x18] sm:$0xff]
    %v54 = vld [vmem:[#allocation3 + $0x20] sm:$0xff]
    %v55 = vld [vmem:[#allocation3 + $0x28] sm:$0xff]
    %v56 = vld [vmem:[#allocation6] sm:$0xff]
    %v57 = vld [vmem:[#allocation6 + $0x8] sm:$0xff]
    %v58 = vld [vmem:[#allocation6 + $0x10] sm:$0xff]
    %v59 = vld [vmem:[#allocation6 + $0x18] sm:$0xff]
    %v60 = vld [vmem:[#allocation6 + $0x20] sm:$0xff]
    %v61 = vld [vmem:[#allocation6 + $0x28] sm:$0xff]
    %v62 = vld [vmem:[#allocation2] sm:$0xff]
    %v63 = vld [vmem:[#allocation2 + $0x8] sm:$0xff]
    %v64 = vld [vmem:[#allocation2 + $0x10] sm:$0xff]
    %v65 = vld [vmem:[#allocation2 + $0x18] sm:$0xff]
    %v66 = vld [vmem:[#allocation2 + $0x20] sm:$0xff]
    %v67 = vld [vmem:[#allocation2 + $0x28] sm:$0xff]
    %v68 = vsub.f32 %v50, %v56
    %v69 = vsub.f32 %v51, %v57
    %v70 = vsub.f32 %v52, %v58
    %v71 = vsub.f32 %v53, %v59
    %v72 = vsub.f32 %v54, %v60
    %v73 = vsub.f32 %v55, %v61
    %v74 = vand.u32 2147483647, %v68
    %v75 = vand.u32 2147483647, %v69
    %v76 = vand.u32 2147483647, %v70
    %v77 = vand.u32 2147483647, %v71
    %v78 = vand.u32 2147483647, %v72
    %v79 = vand.u32 2147483647, %v73
    %v80 = vadd.f32 %v62, %v74
    %v81 = vadd.f32 %v63, %v75
    %v82 = vadd.f32 %v64, %v76
    %v83 = vadd.f32 %v65, %v77
    %v84 = vadd.f32 %v66, %v78
    %v85 = vadd.f32 %v67, %v79
    %86 = vst [vmem:[#allocation2] sm:$0xff] %v80
    %87 = vst [vmem:[#allocation2 + $0x8] sm:$0xff] %v81
    %88 = vst [vmem:[#allocation2 + $0x10] sm:$0xff] %v82
    %89 = vst [vmem:[#allocation2 + $0x18] sm:$0xff] %v83
    %90 = vst [vmem:[#allocation2 + $0x20] sm:$0xff] %v84
    %91 = vst [vmem:[#allocation2 + $0x28] sm:$0xff] %v85
    // Predicated region
    $region22: #{tpu_custom_call.1} parent=1 // pred_check
      %p92 = pneg %p40
    $region23: #{tpu_custom_call.1} parent=1 // pred_check_branch
      %94 = sbr.rel (%p92) target = $region25
    $region24: #{tpu_custom_call.1} parent=1 // pred_region
      %v95 = vld [vmem:[#allocation2] sm:$0xff]
      %v96 = vld [vmem:[#allocation2 + $0x8] sm:$0xff]
      %v97 = vld [vmem:[#allocation2 + $0x10] sm:$0xff]
      %v98 = vld [vmem:[#allocation2 + $0x18] sm:$0xff]
      %v99 = vld [vmem:[#allocation2 + $0x20] sm:$0xff]
      %v100 = vld [vmem:[#allocation2 + $0x28] sm:$0xff]
      %v101 = vadd.f32 %v95, %v96
      %v102 = vadd.f32 %v101, %v97
      %v103 = vadd.f32 %v102, %v98
      %v104 = vadd.f32 %v103, %v99
      %v105 = vadd.f32 %v104, %v100
      %106 = vadd.xlane.f32.xlu0 %v105
      %v107 = vpop.xlane.xlu0 %106
      %v108 = vrot.slane %v107, 4
      %v109 = vadd.f32 %v107, %v108
      %v110 = vrot.slane %v109, 2
      %v111 = vadd.f32 %v109, %v110
      %v112 = vrot.slane %v111, 1
      %v113 = vadd.f32 %v111, %v112
      %s114 = vtos %v113
      %v115 = vstv %s114
      %vm116 = vcmask 0
      %117 = vst.msk [vmem:[#allocation8] sm:$0x1] %vm116, %v115
    $region25: #{tpu_custom_call.1} parent=1 // pred_fallthru
      _
    // Predicated region
    $region26: #{tpu_custom_call.1} parent=1 // pred_check
      _
    $region27: #{tpu_custom_call.1} parent=1 // pred_check_branch
      %119 = sbr.rel (0) target = $region29
    $region28: #{tpu_custom_call.1} parent=1 // pred_region
      %s121 = ssub.s32 16, 16
      %122 = vsyncadd [#allocation5], %s121
      %s124 = sshll.u32 [#allocation8], 4
      %s125 = int_to_ptr.vmem [resolvable:$true] %s124
      %127 = dma.vmem_to_hbm [thread:$0]  %s125, 16, %s2, [#allocation5]
    $region29: #{tpu_custom_call.1} parent=1 // pred_fallthru
      _
    // Predicated region
    $region30: #{tpu_custom_call.1} parent=1 // pred_check
      _
    $region31: #{tpu_custom_call.1} parent=1 // pred_check_branch
      %129 = sbr.rel (0) target = $region33
    $region32: #{tpu_custom_call.1} parent=1 // pred_region
      %130 = dma.done [#allocation5], 16
    $region33: #{tpu_custom_call.1} parent=1 // pred_fallthru
      _
    %131 = vsyncpa [#allocation4], 1
    %132 = vsyncpa [#allocation7], 1
    %133 = vsyncpa [#allocation5], 1

</llo_original>
